<compile_context>
chip_gen: v7x
topology: tpu7x:2x2x1
jax: 0.10.0
libtpu: 0.0.40
codegen_flags: <defaults>
</compile_context>

<pallas_src>
import jax
import jax.numpy as jnp
from jax import lax
from jax.experimental import pallas as pl
from jax.experimental.pallas import tpu as pltpu


def _round_up(x, m):
    return (x + m - 1) // m * m


def _make_block_kernel(row_stride, l_step, halo_pad, c1_p):
    # Tap offsets of a 3x3 window in flattened (row-major) spatial coords.
    tap_offsets = [ky * row_stride + kx for ky in range(3) for kx in range(3)]

    def kernel(x_ref, w1_ref, w2_ref, out_ref, h_scr):
        # x_ref   : (Cin_p, W_blk)      flat batch-folded image, channels on
        #                               sublanes; last channel row is all-ones
        #                               (bias fold).
        # w1_ref  : (C1_p, 9*Cin_p)     conv1 GEMM weights, bias folded in.
        # w2_ref  : (C2,   9*C1_p)      conv2 GEMM weights, bias folded in.
        # out_ref : (C2, L_step)        all batch*spatial positions, lane-dense.
        # h_scr   : (C1_p, W_blk)       VMEM scratch staging the conv1 result.

        # ---------------- conv1: single im2col GEMM ----------------
        # patches1[t*Cin_p + c, p] = x[c, p + tap_offsets[t]]
        p1 = jnp.concatenate(
            [x_ref[:, pl.ds(d, l_step)] for d in tap_offsets], axis=0)
        h = jnp.maximum(
            jnp.dot(w1_ref[...], p1, preferred_element_type=jnp.float32), 0.0)
        h_scr[:, pl.ds(0, l_step)] = h            # (C1_p, L_step), ReLU'd

        # Halo tail of h_scr: only ever multiplied into output lanes that the
        # wrapper crops, so its value is irrelevant for the valid region.
        # Zero it once (scratch persists across grid steps and nothing else
        # writes this region) so reads stay deterministic.
        @pl.when(pl.program_id(0) == 0)
        def _():
            h_scr[:, pl.ds(l_step, halo_pad)] = jnp.zeros(
                (c1_p, halo_pad), jnp.float32)

        # ---------------- conv2: single im2col GEMM ----------------
        p2 = jnp.concatenate(
            [h_scr[:, pl.ds(d, l_step)] for d in tap_offsets], axis=0)
        out_ref[...] = jnp.dot(
            w2_ref[...], p2, preferred_element_type=jnp.float32
        ).astype(out_ref.dtype)

    return kernel


@jax.jit
def block_forward(x, w1, b1, w2, b2):
    """Fused Conv2d(3x3) -> ReLU -> Conv2d(3x3), both 'valid', stride 1.

    x  : (N, Cin, H, W)   float32, NCHW (PyTorch layout)
    w1 : (C1, Cin, 3, 3)  OIHW, C1 = outChannels // 2;  b1 : (C1,)
    w2 : (C2, C1, 3, 3)   OIHW;                         b2 : (C2,)
    returns (N, C2, H-4, W-4) float32
    """
    N, Cin, H, W = x.shape
    C1 = w1.shape[0]
    C2 = w2.shape[0]
    assert H >= 5 and W >= 5, "Block needs spatial dims >= 5"
    Ho, Wo = H - 4, W - 4

    # ---------------- layout parameters ----------------
    # Lane-align the row stride only when the padding overhead is <= 25%.
    W_aligned = _round_up(W, 128)
    row_stride = W_aligned if W_aligned * 4 <= W * 5 else W
    img_stride = H * row_stride

    # Reserve a spare channel row for the folded-bias "ones" channel.
    Cin_p = _round_up(Cin + 1, 8)
    C1_p = _round_up(C1 + 1, 8)

    # Fold NB images per grid step onto the lane axis (all of them for small
    # images => single step for the test shape).
    TARGET_LANES = 8192
    NB = max(1, min(N, TARGET_LANES // img_stride))
    G = -(-N // NB)
    N_pad = G * NB
    L_step = NB * img_stride
    W_blk = _round_up(L_step + 2 * row_stride + 2, 128)   # + tap halo

    # ------------- input: (G, Cin_p, W_blk), batch folded on lanes -------------
    x_p = jnp.pad(x, ((0, N_pad - N), (0, 0), (0, 0), (0, row_stride - W)))
    x_p = x_p.reshape(N_pad, Cin, img_stride)
    ones = jnp.ones((N_pad, 1, img_stride), x.dtype)           # bias channel
    zmid = jnp.zeros((N_pad, Cin_p - Cin - 1, img_stride), x.dtype)
    x_p = jnp.concatenate([x_p, zmid, ones], axis=1)           # (N_pad, Cin_p, img)
    x_grp = x_p.reshape(G, NB, Cin_p, img_stride).transpose(0, 2, 1, 3)
    x_grp = x_grp.reshape(G, Cin_p, L_step)
    x_grp = jnp.pad(x_grp, ((0, 0), (0, 0), (0, W_blk - L_step)))

    # ------------- GEMM weight matrices with biases folded in -------------
    # column (ky*3 + kx)*Cin_p + c  <->  w[o, c, ky, kx];  c == Cin_p-1 at tap 0
    # is the bias column (matches the all-ones input channel).
    w1_g = jnp.zeros((C1_p, 9, Cin_p), jnp.float32)
    w1_g = w1_g.at[:C1, :, :Cin].set(
        jnp.transpose(w1, (0, 2, 3, 1)).reshape(C1, 9, Cin))
    w1_g = w1_g.at[:C1, 0, Cin_p - 1].set(b1)
    w1_g = w1_g.at[C1_p - 1, 0, Cin_p - 1].set(1.0)  # regenerates ones row in h
    w1_mat = w1_g.reshape(C1_p, 9 * Cin_p)

    w2_g = jnp.zeros((C2, 9, C1_p), jnp.float32)
    w2_g = w2_g.at[:, :, :C1].set(
        jnp.transpose(w2, (0, 2, 3, 1)).reshape(C2, 9, C1))
    w2_g = w2_g.at[:, 0, C1_p - 1].set(b2)
    w2_mat = w2_g.reshape(C2, 9 * C1_p)

    kernel = _make_block_kernel(row_stride, L_step, W_blk - L_step, C1_p)

    flops = 2 * (C1_p * 9 * Cin_p + C2 * 9 * C1_p) * L_step * G
    bytes_accessed = 4 * (x_grp.size + w1_mat.size + w2_mat.size
                          + G * C2 * L_step)

    out = pl.pallas_call(
        kernel,
        out_shape=jax.ShapeDtypeStruct((G, C2, L_step), jnp.float32),
        grid_spec=pltpu.PrefetchScalarGridSpec(
            num_scalar_prefetch=0,
            grid=(G,),
            in_specs=[
                pl.BlockSpec((None, Cin_p, W_blk), lambda g: (g, 0, 0)),
                pl.BlockSpec((C1_p, 9 * Cin_p), lambda g: (0, 0)),
                pl.BlockSpec((C2, 9 * C1_p), lambda g: (0, 0)),
            ],
            out_specs=pl.BlockSpec((None, C2, L_step), lambda g: (g, 0, 0)),
            scratch_shapes=[pltpu.VMEM((C1_p, W_blk), jnp.float32)],
        ),
        compiler_params=pltpu.CompilerParams(
            dimension_semantics=("parallel",)),
        cost_estimate=pl.CostEstimate(
            flops=flops, transcendentals=0, bytes_accessed=bytes_accessed),
    )(x_grp, w1_mat, w2_mat)

    # Unfold the batch, reshape (free) back to the image grid, crop the valid
    # region (see correctness note at top of file).
    out = out.reshape(G, C2, NB, H, row_stride)
    out = jnp.transpose(out, (0, 2, 1, 3, 4)).reshape(N_pad, C2, H, row_stride)
    return out[:N, :, :Ho, :Wo]


def _reference(x, w1, b1, w2, b2):
    """Pure-JAX reference (same math, NCHW/OIHW like PyTorch)."""
    dn = ("NCHW", "OIHW", "NCHW")
    y = lax.conv_general_dilated(x, w1, (1, 1), "VALID", dimension_numbers=dn,
                                 precision=lax.Precision.HIGHEST)
    y = jnp.maximum(y + b1.reshape(1, -1, 1, 1), 0.0)
    y = lax.conv_general_dilated(y, w2, (1, 1), "VALID", dimension_numbers=dn,
                                 precision=lax.Precision.HIGHEST)
    return y + b2.reshape(1, -1, 1, 1)


if __name__ == "__main__":
    # Shapes consistent with the module: N=2, inChannels=4, outChannels=8
    # (so conv1 has 4 output channels), spatial 16x16.
    N, Cin, H, W = 2, 4, 16, 16
    out_channels = 8
    C1, C2 = out_channels // 2, out_channels

    key = jax.random.PRNGKey(0)
    kx, kw1, kb1, kw2, kb2 = jax.random.split(key, 5)

    x = jax.random.normal(kx, (N, Cin, H, W), dtype=jnp.float32)
    # Deterministic synthetic parameter init (kaiming-uniform-like scale),
    # PyTorch-native OIHW layout.
    s1 = 1.0 / (Cin * 9) ** 0.5
    s2 = 1.0 / (C1 * 9) ** 0.5
    w1 = jax.random.uniform(kw1, (C1, Cin, 3, 3), jnp.float32, -s1, s1)
    b1 = jax.random.uniform(kb1, (C1,), jnp.float32, -s1, s1)
    w2 = jax.random.uniform(kw2, (C2, C1, 3, 3), jnp.float32, -s2, s2)
    b2 = jax.random.uniform(kb2, (C2,), jnp.float32, -s2, s2)

    y = block_forward(x, w1, b1, w2, b2)
    jax.block_until_ready(y)

    y_ref = _reference(x, w1, b1, w2, b2)
    assert y.shape == (N, C2, H - 4, W - 4), y.shape
    # 1e-3 tolerance: any indexing/layout bug produces O(1e-1) errors; this
    # only allows for MXU vs. XLA-conv accumulation-order differences.
    assert jnp.allclose(y, y_ref, atol=1e-3, rtol=1e-3), "mismatch vs reference"

    print("KERNEL_OK")
</pallas_src>

<mosaic_0001>
module attributes {stable_mosaic.version = 11 : i64} {
  func.func @kernel(%arg0: i32, %arg1: memref<1x8x640xf32, #tpu.memory_space<vmem>>, %arg2: memref<8x72xf32, #tpu.memory_space<vmem>>, %arg3: memref<8x72xf32, #tpu.memory_space<vmem>>, %arg4: memref<1x8x512xf32, #tpu.memory_space<vmem>>, %arg5: memref<8x640xf32, #tpu.memory_space<vmem>>) attributes {dimension_semantics = [#tpu.dimension_semantics<parallel>], iteration_bounds = array<i64: 1>, scalar_prefetch = 0 : i64, scratch_operands = 1 : i64, tpu.core_type = #tpu.core_type<tc>, window_params = [{transform_indices = @transform_0, window_bounds = array<i64: 1, 8, 640>}, {pipeline_mode = #tpu.pipeline_mode<synchronous>, transform_indices = @transform_1, window_bounds = array<i64: 8, 72>}, {pipeline_mode = #tpu.pipeline_mode<synchronous>, transform_indices = @transform_2, window_bounds = array<i64: 8, 72>}, {transform_indices = @transform_3, window_bounds = array<i64: 1, 8, 512>}]} {
    %c0 = arith.constant 0 : index
    %c0_0 = arith.constant 0 : index
    %c0_1 = arith.constant 0 : index
    %0 = vector.load %arg1[%c0, %c0_0, %c0_1] : memref<1x8x640xf32, #tpu.memory_space<vmem>>, vector<1x8x512xf32>
    %1 = vector.shape_cast %0 : vector<1x8x512xf32> to vector<8x512xf32>
    %c0_2 = arith.constant 0 : index
    %c0_3 = arith.constant 0 : index
    %c1 = arith.constant 1 : index
    %2 = vector.load %arg1[%c0_2, %c0_3, %c1] : memref<1x8x640xf32, #tpu.memory_space<vmem>>, vector<1x8x512xf32>
    %3 = vector.shape_cast %2 : vector<1x8x512xf32> to vector<8x512xf32>
    %c0_4 = arith.constant 0 : index
    %c0_5 = arith.constant 0 : index
    %c2 = arith.constant 2 : index
    %4 = vector.load %arg1[%c0_4, %c0_5, %c2] : memref<1x8x640xf32, #tpu.memory_space<vmem>>, vector<1x8x512xf32>
    %5 = vector.shape_cast %4 : vector<1x8x512xf32> to vector<8x512xf32>
    %c0_6 = arith.constant 0 : index
    %c0_7 = arith.constant 0 : index
    %c16 = arith.constant 16 : index
    %6 = vector.load %arg1[%c0_6, %c0_7, %c16] : memref<1x8x640xf32, #tpu.memory_space<vmem>>, vector<1x8x512xf32>
    %7 = vector.shape_cast %6 : vector<1x8x512xf32> to vector<8x512xf32>
    %c0_8 = arith.constant 0 : index
    %c0_9 = arith.constant 0 : index
    %c17 = arith.constant 17 : index
    %8 = vector.load %arg1[%c0_8, %c0_9, %c17] : memref<1x8x640xf32, #tpu.memory_space<vmem>>, vector<1x8x512xf32>
    %9 = vector.shape_cast %8 : vector<1x8x512xf32> to vector<8x512xf32>
    %c0_10 = arith.constant 0 : index
    %c0_11 = arith.constant 0 : index
    %c18 = arith.constant 18 : index
    %10 = vector.load %arg1[%c0_10, %c0_11, %c18] : memref<1x8x640xf32, #tpu.memory_space<vmem>>, vector<1x8x512xf32>
    %11 = vector.shape_cast %10 : vector<1x8x512xf32> to vector<8x512xf32>
    %c0_12 = arith.constant 0 : index
    %c0_13 = arith.constant 0 : index
    %c32 = arith.constant 32 : index
    %12 = vector.load %arg1[%c0_12, %c0_13, %c32] : memref<1x8x640xf32, #tpu.memory_space<vmem>>, vector<1x8x512xf32>
    %13 = vector.shape_cast %12 : vector<1x8x512xf32> to vector<8x512xf32>
    %c0_14 = arith.constant 0 : index
    %c0_15 = arith.constant 0 : index
    %c33 = arith.constant 33 : index
    %14 = vector.load %arg1[%c0_14, %c0_15, %c33] : memref<1x8x640xf32, #tpu.memory_space<vmem>>, vector<1x8x512xf32>
    %15 = vector.shape_cast %14 : vector<1x8x512xf32> to vector<8x512xf32>
    %c0_16 = arith.constant 0 : index
    %c0_17 = arith.constant 0 : index
    %c34 = arith.constant 34 : index
    %16 = vector.load %arg1[%c0_16, %c0_17, %c34] : memref<1x8x640xf32, #tpu.memory_space<vmem>>, vector<1x8x512xf32>
    %17 = vector.shape_cast %16 : vector<1x8x512xf32> to vector<8x512xf32>
    %18 = tpu.concatenate %1, %3, %5, %7, %9, %11, %13, %15, %17 in 0 : vector<8x512xf32>, vector<8x512xf32>, vector<8x512xf32>, vector<8x512xf32>, vector<8x512xf32>, vector<8x512xf32>, vector<8x512xf32>, vector<8x512xf32>, vector<8x512xf32> -> vector<72x512xf32>
    %c0_18 = arith.constant 0 : index
    %c0_19 = arith.constant 0 : index
    %19 = vector.load %arg2[%c0_18, %c0_19] : memref<8x72xf32, #tpu.memory_space<vmem>>, vector<8x72xf32>
    %cst = arith.constant dense<0.000000e+00> : vector<8x512xf32>
    %20 = tpu.matmul %19, %18, %cst {dimension_numbers = #tpu.dot_dimension_numbers<[1], [0], [0], [1], [0, 0, 1, 1], [], []>} : vector<8x72xf32>, vector<72x512xf32>, vector<8x512xf32> -> vector<8x512xf32>
    %cst_20 = arith.constant 0.000000e+00 : f32
    %21 = vector.broadcast %cst_20 : f32 to vector<8x512xf32>
    %22 = arith.maximumf %20, %21 : vector<8x512xf32>
    %c0_21 = arith.constant 0 : index
    %c0_22 = arith.constant 0 : index
    %23 = vector.load %arg5[%c0_21, %c0_22] : memref<8x640xf32, #tpu.memory_space<vmem>>, vector<8x512xf32>
    tpu.vector_store %arg5[%c0_21, %c0_22], %22 {strides = array<i32>} : memref<8x640xf32, #tpu.memory_space<vmem>>, vector<8x512xf32>,
    %c0_i32 = arith.constant 0 : i32
    %24 = arith.cmpi eq, %arg0, %c0_i32 : i32
    %25 = arith.extui %24 : i1 to i32
    %c0_i32_23 = arith.constant 0 : i32
    %26 = arith.cmpi ne, %25, %c0_i32_23 : i32
    scf.if %26 {
      %cst_48 = arith.constant 0.000000e+00 : f32
      %42 = vector.broadcast %cst_48 : f32 to vector<8x128xf32>
      %c0_49 = arith.constant 0 : index
      %c512 = arith.constant 512 : index
      %43 = vector.load %arg5[%c0_49, %c512] : memref<8x640xf32, #tpu.memory_space<vmem>>, vector<8x128xf32>
      tpu.vector_store %arg5[%c0_49, %c512], %42 {strides = array<i32>} : memref<8x640xf32, #tpu.memory_space<vmem>>, vector<8x128xf32>,
    } else {
    }
    %c0_24 = arith.constant 0 : index
    %c0_25 = arith.constant 0 : index
    %27 = vector.load %arg5[%c0_24, %c0_25] : memref<8x640xf32, #tpu.memory_space<vmem>>, vector<8x512xf32>
    %c0_26 = arith.constant 0 : index
    %c1_27 = arith.constant 1 : index
    %28 = vector.load %arg5[%c0_26, %c1_27] : memref<8x640xf32, #tpu.memory_space<vmem>>, vector<8x512xf32>
    %c0_28 = arith.constant 0 : index
    %c2_29 = arith.constant 2 : index
    %29 = vector.load %arg5[%c0_28, %c2_29] : memref<8x640xf32, #tpu.memory_space<vmem>>, vector<8x512xf32>
    %c0_30 = arith.constant 0 : index
    %c16_31 = arith.constant 16 : index
    %30 = vector.load %arg5[%c0_30, %c16_31] : memref<8x640xf32, #tpu.memory_space<vmem>>, vector<8x512xf32>
    %c0_32 = arith.constant 0 : index
    %c17_33 = arith.constant 17 : index
    %31 = vector.load %arg5[%c0_32, %c17_33] : memref<8x640xf32, #tpu.memory_space<vmem>>, vector<8x512xf32>
    %c0_34 = arith.constant 0 : index
    %c18_35 = arith.constant 18 : index
    %32 = vector.load %arg5[%c0_34, %c18_35] : memref<8x640xf32, #tpu.memory_space<vmem>>, vector<8x512xf32>
    %c0_36 = arith.constant 0 : index
    %c32_37 = arith.constant 32 : index
    %33 = vector.load %arg5[%c0_36, %c32_37] : memref<8x640xf32, #tpu.memory_space<vmem>>, vector<8x512xf32>
    %c0_38 = arith.constant 0 : index
    %c33_39 = arith.constant 33 : index
    %34 = vector.load %arg5[%c0_38, %c33_39] : memref<8x640xf32, #tpu.memory_space<vmem>>, vector<8x512xf32>
    %c0_40 = arith.constant 0 : index
    %c34_41 = arith.constant 34 : index
    %35 = vector.load %arg5[%c0_40, %c34_41] : memref<8x640xf32, #tpu.memory_space<vmem>>, vector<8x512xf32>
    %36 = tpu.concatenate %27, %28, %29, %30, %31, %32, %33, %34, %35 in 0 : vector<8x512xf32>, vector<8x512xf32>, vector<8x512xf32>, vector<8x512xf32>, vector<8x512xf32>, vector<8x512xf32>, vector<8x512xf32>, vector<8x512xf32>, vector<8x512xf32> -> vector<72x512xf32>
    %c0_42 = arith.constant 0 : index
    %c0_43 = arith.constant 0 : index
    %37 = vector.load %arg3[%c0_42, %c0_43] : memref<8x72xf32, #tpu.memory_space<vmem>>, vector<8x72xf32>
    %cst_44 = arith.constant dense<0.000000e+00> : vector<8x512xf32>
    %38 = tpu.matmul %37, %36, %cst_44 {dimension_numbers = #tpu.dot_dimension_numbers<[1], [0], [0], [1], [0, 0, 1, 1], [], []>} : vector<8x72xf32>, vector<72x512xf32>, vector<8x512xf32> -> vector<8x512xf32>
    %c0_45 = arith.constant 0 : index
    %c0_46 = arith.constant 0 : index
    %c0_47 = arith.constant 0 : index
    %39 = vector.load %arg4[%c0_45, %c0_46, %c0_47] : memref<1x8x512xf32, #tpu.memory_space<vmem>>, vector<1x8x512xf32>
    %40 = vector.shape_cast %39 : vector<1x8x512xf32> to vector<8x512xf32>
    %41 = vector.shape_cast %38 : vector<8x512xf32> to vector<1x8x512xf32>
    tpu.vector_store %arg4[%c0_45, %c0_46, %c0_47], %41 {strides = array<i32>} : memref<1x8x512xf32, #tpu.memory_space<vmem>>, vector<1x8x512xf32>,
    return
  }
  func.func @transform_0(%arg0: i32) -> (i32, i32, i32) {
    %c0_i32 = arith.constant 0 : i32
    %c0_i32_0 = arith.constant 0 : i32
    %c0_i32_1 = arith.constant 0 : i32
    return %arg0, %c0_i32, %c0_i32_0 : i32, i32, i32
  }
  func.func @transform_1(%arg0: i32) -> (i32, i32) {
    %c0_i32 = arith.constant 0 : i32
    %c0_i32_0 = arith.constant 0 : i32
    %c0_i32_1 = arith.constant 0 : i32
    return %c0_i32, %c0_i32_0 : i32, i32
  }
  func.func @transform_2(%arg0: i32) -> (i32, i32) {
    %c0_i32 = arith.constant 0 : i32
    %c0_i32_0 = arith.constant 0 : i32
    %c0_i32_1 = arith.constant 0 : i32
    return %c0_i32, %c0_i32_0 : i32, i32
  }
  func.func @transform_3(%arg0: i32) -> (i32, i32, i32) {
    %c0_i32 = arith.constant 0 : i32
    %c0_i32_0 = arith.constant 0 : i32
    %c0_i32_1 = arith.constant 0 : i32
    return %arg0, %c0_i32, %c0_i32_0 : i32, i32, i32
  }
}

</mosaic_0001>

<llo_original>
// kernel: block_forward.1
$region0: #{block_forward.1}
  #allocation0 [shape = 'u32[]', space=smem, size = 0x4, offset = 0x4, fixed_abs, tag = 'smem constant byte address 0x4 - core index']
  #allocation1 [shape = 'u32[144,128]{1,0:T(1,128)}', space=vmem, size = 0x12000, scoped, tag = 'internal scratch']
  #allocation2 [shape = 'f32[8,640]{1,0:T(8,128)}', space=vmem, size = 0x5000, scoped, tag = 'scratch operand']
  %s0 = inlined_call_operand.vmem [shape: f32[1,8,640], index: 0, kind: input, shape index: {}]
  %s1 = inlined_call_operand.vmem [shape: f32[8,72], index: 1, kind: input, shape index: {}]
  %s2 = inlined_call_operand.vmem [shape: f32[8,72], index: 2, kind: input, shape index: {}]
  %s3 = inlined_call_operand.vmem [shape: f32[1,8,512], index: 3, kind: output, shape index: {}]
  %s4 = sld [smem:[#allocation0]]
  $region26: #{block_forward.1} parent=0
    _
  %s6 = ssub.s32 1, %s4
  %s7 = scalar_select 0, %s6, %s4
  // Predicated region
  $region2: #{block_forward.1} parent=0 // pred_check
    _
  $region3: #{block_forward.1} parent=0 // pred_check_branch
    %9 = sbr.rel (0) target = $region5
  $region4: #{block_forward.1} parent=0 // pred_region
    _
  $region5: #{block_forward.1} parent=0 // pred_fallthru
    _
  // Predicated region
  $region6: #{block_forward.1} parent=0 // pred_check
    _
  $region7: #{block_forward.1} parent=0 // pred_check_branch
    %11 = sbr.rel (0) target = $region9
  $region8: #{block_forward.1} parent=0 // pred_region
    _
  $region9: #{block_forward.1} parent=0 // pred_fallthru
    _
  // Predicated region
  $region10: #{block_forward.1} parent=0 // pred_check
    _
  $region11: #{block_forward.1} parent=0 // pred_check_branch
    %13 = sbr.rel (0) target = $region13
  $region12: #{block_forward.1} parent=0 // pred_region
    _
  $region13: #{block_forward.1} parent=0 // pred_fallthru
    _
  %v14 = vld [vmem:[%s0] sm:$0xff]
  %v15 = vld [vmem:[%s0 + $0x8] sm:$0xff]
  %v16 = vld [vmem:[%s0 + $0x10] sm:$0xff]
  %v17 = vld [vmem:[%s0 + $0x18] sm:$0xff]
  %v18 = vld [vmem:[%s0] sm:$0xff]
  %v19 = vld [vmem:[%s0 + $0x8] sm:$0xff]
  %v20 = vld [vmem:[%s0 + $0x10] sm:$0xff]
  %v21 = vld [vmem:[%s0 + $0x18] sm:$0xff]
  %v22 = vld [vmem:[%s0 + $0x20] sm:$0xff]
  %28 = vrot.lane.b32.xlu0 %v18, 127
  %v29 = vpop.permute.xlu0 %28
  %30 = vrot.lane.b32.xlu0 %v19, 127
  %v31 = vpop.permute.xlu0 %30
  %32 = vrot.lane.b32.xlu0 %v20, 127
  %v33 = vpop.permute.xlu0 %32
  %34 = vrot.lane.b32.xlu0 %v21, 127
  %v35 = vpop.permute.xlu0 %34
  %36 = vrot.lane.b32.xlu0 %v22, 127
  %v37 = vpop.permute.xlu0 %36
  %vm38 = vcmask 1039360
  %v39 = vsel %vm38, %v29, %v31
  %v40 = vsel %vm38, %v31, %v33
  %v41 = vsel %vm38, %v33, %v35
  %v42 = vsel %vm38, %v35, %v37
  %47 = vrot.lane.b32.xlu0 %v18, 126
  %v48 = vpop.permute.xlu0 %47
  %49 = vrot.lane.b32.xlu0 %v19, 126
  %v50 = vpop.permute.xlu0 %49
  %51 = vrot.lane.b32.xlu0 %v20, 126
  %v52 = vpop.permute.xlu0 %51
  %53 = vrot.lane.b32.xlu0 %v21, 126
  %v54 = vpop.permute.xlu0 %53
  %55 = vrot.lane.b32.xlu0 %v22, 126
  %v56 = vpop.permute.xlu0 %55
  %vm57 = vcmask 1031168
  %v58 = vsel %vm57, %v48, %v50
  %v59 = vsel %vm57, %v50, %v52
  %v60 = vsel %vm57, %v52, %v54
  %v61 = vsel %vm57, %v54, %v56
  %66 = vrot.lane.b32.xlu0 %v18, 112
  %v67 = vpop.permute.xlu0 %66
  %68 = vrot.lane.b32.xlu0 %v19, 112
  %v69 = vpop.permute.xlu0 %68
  %70 = vrot.lane.b32.xlu0 %v20, 112
  %v71 = vpop.permute.xlu0 %70
  %72 = vrot.lane.b32.xlu0 %v21, 112
  %v73 = vpop.permute.xlu0 %72
  %74 = vrot.lane.b32.xlu0 %v22, 112
  %v75 = vpop.permute.xlu0 %74
  %vm76 = vcmask 916480
  %v77 = vsel %vm76, %v67, %v69
  %v78 = vsel %vm76, %v69, %v71
  %v79 = vsel %vm76, %v71, %v73
  %v80 = vsel %vm76, %v73, %v75
  %85 = vrot.lane.b32.xlu0 %v18, 111
  %v86 = vpop.permute.xlu0 %85
  %87 = vrot.lane.b32.xlu0 %v19, 111
  %v88 = vpop.permute.xlu0 %87
  %89 = vrot.lane.b32.xlu0 %v20, 111
  %v90 = vpop.permute.xlu0 %89
  %91 = vrot.lane.b32.xlu0 %v21, 111
  %v92 = vpop.permute.xlu0 %91
  %93 = vrot.lane.b32.xlu0 %v22, 111
  %v94 = vpop.permute.xlu0 %93
  %vm95 = vcmask 908288
  %v96 = vsel %vm95, %v86, %v88
  %v97 = vsel %vm95, %v88, %v90
  %v98 = vsel %vm95, %v90, %v92
  %v99 = vsel %vm95, %v92, %v94
  %104 = vrot.lane.b32.xlu0 %v18, 110
  %v105 = vpop.permute.xlu0 %104
  %106 = vrot.lane.b32.xlu0 %v19, 110
  %v107 = vpop.permute.xlu0 %106
  %108 = vrot.lane.b32.xlu0 %v20, 110
  %v109 = vpop.permute.xlu0 %108
  %110 = vrot.lane.b32.xlu0 %v21, 110
  %v111 = vpop.permute.xlu0 %110
  %112 = vrot.lane.b32.xlu0 %v22, 110
  %v113 = vpop.permute.xlu0 %112
  %vm114 = vcmask 900096
  %v115 = vsel %vm114, %v105, %v107
  %v116 = vsel %vm114, %v107, %v109
  %v117 = vsel %vm114, %v109, %v111
  %v118 = vsel %vm114, %v111, %v113
  %123 = vrot.lane.b32.xlu0 %v18, 96
  %v124 = vpop.permute.xlu0 %123
  %125 = vrot.lane.b32.xlu0 %v19, 96
  %v126 = vpop.permute.xlu0 %125
  %127 = vrot.lane.b32.xlu0 %v20, 96
  %v128 = vpop.permute.xlu0 %127
  %129 = vrot.lane.b32.xlu0 %v21, 96
  %v130 = vpop.permute.xlu0 %129
  %131 = vrot.lane.b32.xlu0 %v22, 96
  %v132 = vpop.permute.xlu0 %131
  %vm133 = vcmask 785408
  %v134 = vsel %vm133, %v124, %v126
  %v135 = vsel %vm133, %v126, %v128
  %v136 = vsel %vm133, %v128, %v130
  %v137 = vsel %vm133, %v130, %v132
  %142 = vrot.lane.b32.xlu0 %v18, 95
  %v143 = vpop.permute.xlu0 %142
  %144 = vrot.lane.b32.xlu0 %v19, 95
  %v145 = vpop.permute.xlu0 %144
  %146 = vrot.lane.b32.xlu0 %v20, 95
  %v147 = vpop.permute.xlu0 %146
  %148 = vrot.lane.b32.xlu0 %v21, 95
  %v149 = vpop.permute.xlu0 %148
  %150 = vrot.lane.b32.xlu0 %v22, 95
  %v151 = vpop.permute.xlu0 %150
  %vm152 = vcmask 777216
  %v153 = vsel %vm152, %v143, %v145
  %v154 = vsel %vm152, %v145, %v147
  %v155 = vsel %vm152, %v147, %v149
  %v156 = vsel %vm152, %v149, %v151
  %161 = vrot.lane.b32.xlu0 %v18, 94
  %v162 = vpop.permute.xlu0 %161
  %163 = vrot.lane.b32.xlu0 %v19, 94
  %v164 = vpop.permute.xlu0 %163
  %165 = vrot.lane.b32.xlu0 %v20, 94
  %v166 = vpop.permute.xlu0 %165
  %167 = vrot.lane.b32.xlu0 %v21, 94
  %v168 = vpop.permute.xlu0 %167
  %169 = vrot.lane.b32.xlu0 %v22, 94
  %v170 = vpop.permute.xlu0 %169
  %vm171 = vcmask 769024
  %v172 = vsel %vm171, %v162, %v164
  %v173 = vsel %vm171, %v164, %v166
  %v174 = vsel %vm171, %v166, %v168
  %v175 = vsel %vm171, %v168, %v170
  %v180 = vld [vmem:[%s1] sm:$0xff]
  %vm181 = vcmask 588800
  %v183 = vsel %vm181, %v180, 0
  %185 = vmatprep.subr.mxu0 %v15
  %186 = vmatpush1.msra.mxu0 %v14
  %187 = vmatprep.subr.mxu0 %v40
  %188 = vmatpush1.msra.mxu0 %v39
  %189 = vmatprep.subr.mxu0 %v59
  %190 = vmatpush1.msra.mxu0 %v58
  %191 = vmatprep.subr.mxu0 %v78
  %192 = vmatpush1.msra.mxu0 %v77
  %193 = vmatprep.subr.mxu0 %v97
  %194 = vmatpush1.msra.mxu0 %v96
  %195 = vmatprep.subr.mxu0 %v116
  %196 = vmatpush1.msra.mxu0 %v115
  %197 = vmatprep.subr.mxu0 %v135
  %198 = vmatpush1.msra.mxu0 %v134
  %199 = vmatprep.subr.mxu0 %v154
  %200 = vmatpush1.msra.mxu0 %v153
  %201 = vmatprep.subr.mxu0 %v173
  %202 = vmatpush1.msra.mxu0 %v172
  %203 = vmatprep.subr.mxu0 0.0
  %204 = vmatpush1.msra.mxu0 0.0
  %205 = vmatprep.subr.mxu0 0.0
  %206 = vmatpush1.msra.mxu0 0.0
  %207 = vmatprep.subr.mxu0 0.0
  %208 = vmatpush1.msra.mxu0 0.0
  %209 = vmatprep.subr.mxu0 0.0
  %210 = vmatpush1.msra.mxu0 0.0
  %211 = vmatprep.subr.mxu0 0.0
  %212 = vmatpush1.msra.mxu0 0.0
  %213 = vmatprep.subr.mxu0 0.0
  %214 = vmatpush1.msra.mxu0 0.0
  %215 = vmatprep.subr.mxu0 0.0
  %216 = vmatpush1.msra.mxu0 0.0
  %217 = vmatprep.subr.mxu0 0.0
  %218 = vmatpush1.msra.mxu0 0.0
  %219 = vmatprep.subr.mxu0 0.0
  %220 = vmatpush1.msra.mxu0 0.0
  %221 = vmatprep.subr.mxu0 0.0
  %222 = vmatpush1.msra.mxu0 0.0
  %223 = vmatprep.subr.mxu0 0.0
  %224 = vmatpush1.msra.mxu0 0.0
  %225 = vmatprep.subr.mxu0 0.0
  %226 = vmatpush1.msra.mxu0 0.0
  %227 = vmatprep.subr.mxu0 0.0
  %228 = vmatpush1.msra.mxu0 0.0
  %229 = vmatprep.subr.mxu0 0.0
  %230 = vmatpush1.msra.mxu0 0.0
  %231 = vmatprep.subr.mxu0 0.0
  %232 = vmatpush1.msra.mxu0 0.0
  %233 = vmatprep.subr.mxu0 0.0
  %234 = vmatpush1.msra.mxu0 0.0
  %235 = vmatprep.subr.mxu0 0.0
  %236 = vmatpush1.msra.mxu0 0.0
  %237 = vmatprep.subr.mxu0 0.0
  %238 = vmatpush1.msra.mxu0 0.0
  %239 = vmatprep.subr.mxu0 0.0
  %240 = vmatpush1.msra.mxu0 0.0
  %241 = vmatprep.subr.mxu0 0.0
  %242 = vmatpush1.msra.mxu0 0.0
  %243 = vmatprep.subr.mxu0 0.0
  %244 = vmatpush1.msra.mxu0 0.0
  %245 = vmatprep.subr.mxu0 0.0
  %246 = vmatpush1.msra.mxu0 0.0
  %247 = vmatprep.subr.mxu0 0.0
  %248 = vmatpush1.msra.mxu0 0.0
  %249 = vmatprep.mubr.f32.mxu0 0.0
  %250 = vmatmul.mubr.f32.gmra.mrb[0].mxu0 %v183
  %v251 = vpop.f32.mrb[0].mxu0
  %v252 = vadd.f32 0.0, %v251
  %v253 = vpop.f32.mrb[0].mxu0
  %v254 = vadd.f32 0.0, %v253
  %255 = vdwg.mxu0
  %256 = vmatprep.subr.mxu0 %v17
  %257 = vmatpush1.msra.mxu0 %v16
  %258 = vmatprep.subr.mxu0 %v42
  %259 = vmatpush1.msra.mxu0 %v41
  %260 = vmatprep.subr.mxu0 %v61
  %261 = vmatpush1.msra.mxu0 %v60
  %262 = vmatprep.subr.mxu0 %v80
  %263 = vmatpush1.msra.mxu0 %v79
  %264 = vmatprep.subr.mxu0 %v99
  %265 = vmatpush1.msra.mxu0 %v98
  %266 = vmatprep.subr.mxu0 %v118
  %267 = vmatpush1.msra.mxu0 %v117
  %268 = vmatprep.subr.mxu0 %v137
  %269 = vmatpush1.msra.mxu0 %v136
  %270 = vmatprep.subr.mxu0 %v156
  %271 = vmatpush1.msra.mxu0 %v155
  %272 = vmatprep.subr.mxu0 %v175
  %273 = vmatpush1.msra.mxu0 %v174
  %274 = vmatprep.subr.mxu0 0.0
  %275 = vmatpush1.msra.mxu0 0.0
  %276 = vmatprep.subr.mxu0 0.0
  %277 = vmatpush1.msra.mxu0 0.0
  %278 = vmatprep.subr.mxu0 0.0
  %279 = vmatpush1.msra.mxu0 0.0
  %280 = vmatprep.subr.mxu0 0.0
  %281 = vmatpush1.msra.mxu0 0.0
  %282 = vmatprep.subr.mxu0 0.0
  %283 = vmatpush1.msra.mxu0 0.0
  %284 = vmatprep.subr.mxu0 0.0
  %285 = vmatpush1.msra.mxu0 0.0
  %286 = vmatprep.subr.mxu0 0.0
  %287 = vmatpush1.msra.mxu0 0.0
  %288 = vmatprep.subr.mxu0 0.0
  %289 = vmatpush1.msra.mxu0 0.0
  %290 = vmatprep.subr.mxu0 0.0
  %291 = vmatpush1.msra.mxu0 0.0
  %292 = vmatprep.subr.mxu0 0.0
  %293 = vmatpush1.msra.mxu0 0.0
  %294 = vmatprep.subr.mxu0 0.0
  %295 = vmatpush1.msra.mxu0 0.0
  %296 = vmatprep.subr.mxu0 0.0
  %297 = vmatpush1.msra.mxu0 0.0
  %298 = vmatprep.subr.mxu0 0.0
  %299 = vmatpush1.msra.mxu0 0.0
  %300 = vmatprep.subr.mxu0 0.0
  %301 = vmatpush1.msra.mxu0 0.0
  %302 = vmatprep.subr.mxu0 0.0
  %303 = vmatpush1.msra.mxu0 0.0
  %304 = vmatprep.subr.mxu0 0.0
  %305 = vmatpush1.msra.mxu0 0.0
  %306 = vmatprep.subr.mxu0 0.0
  %307 = vmatpush1.msra.mxu0 0.0
  %308 = vmatprep.subr.mxu0 0.0
  %309 = vmatpush1.msra.mxu0 0.0
  %310 = vmatprep.subr.mxu0 0.0
  %311 = vmatpush1.msra.mxu0 0.0
  %312 = vmatprep.subr.mxu0 0.0
  %313 = vmatpush1.msra.mxu0 0.0
  %314 = vmatprep.subr.mxu0 0.0
  %315 = vmatpush1.msra.mxu0 0.0
  %316 = vmatprep.subr.mxu0 0.0
  %317 = vmatpush1.msra.mxu0 0.0
  %318 = vmatprep.subr.mxu0 0.0
  %319 = vmatpush1.msra.mxu0 0.0
  %320 = vmatprep.mubr.f32.mxu0 0.0
  %321 = vmatmul.mubr.f32.gmra.mrb[0].mxu0 %v183
  %v322 = vpop.f32.mrb[0].mxu0
  %v323 = vadd.f32 0.0, %v322
  %v324 = vpop.f32.mrb[0].mxu0
  %v325 = vadd.f32 0.0, %v324
  %326 = vdwg.mxu0
  %v327 = vmax.f32 %v252, 0.0
  %v328 = vmax.f32 %v254, 0.0
  %v329 = vmax.f32 %v323, 0.0
  %v330 = vmax.f32 %v325, 0.0
  %331 = vst [vmem:[#allocation2] sm:$0xff] %v327
  %332 = vst [vmem:[#allocation2 + $0x8] sm:$0xff] %v328
  %333 = vst [vmem:[#allocation2 + $0x10] sm:$0xff] %v329
  %334 = vst [vmem:[#allocation2 + $0x18] sm:$0xff] %v330
  %p335 = scmp.eq.s32.totalorder 0, 0
  // Predicated region
  $region14: #{block_forward.1} parent=0 // pred_check
    %p336 = pneg %p335
  $region15: #{block_forward.1} parent=0 // pred_check_branch
    %338 = sbr.rel (%p336) target = $region17
  $region16: #{block_forward.1} parent=0 // pred_region
    %339 = vst [vmem:[#allocation2 + $0x20] sm:$0xff] 0.0
  $region17: #{block_forward.1} parent=0 // pred_fallthru
    _
  %v340 = vld [vmem:[#allocation2] sm:$0xff]
  %v341 = vld [vmem:[#allocation2 + $0x8] sm:$0xff]
  %v342 = vld [vmem:[#allocation2 + $0x10] sm:$0xff]
  %v343 = vld [vmem:[#allocation2 + $0x18] sm:$0xff]
  %v344 = vld [vmem:[#allocation2] sm:$0xff]
  %v345 = vld [vmem:[#allocation2 + $0x8] sm:$0xff]
  %v346 = vld [vmem:[#allocation2 + $0x10] sm:$0xff]
  %v347 = vld [vmem:[#allocation2 + $0x18] sm:$0xff]
  %v348 = vld [vmem:[#allocation2 + $0x20] sm:$0xff]
  %354 = vrot.lane.b32.xlu0 %v344, 127
  %v355 = vpop.permute.xlu0 %354
  %356 = vrot.lane.b32.xlu0 %v345, 127
  %v357 = vpop.permute.xlu0 %356
  %358 = vrot.lane.b32.xlu0 %v346, 127
  %v359 = vpop.permute.xlu0 %358
  %360 = vrot.lane.b32.xlu0 %v347, 127
  %v361 = vpop.permute.xlu0 %360
  %362 = vrot.lane.b32.xlu0 %v348, 127
  %v363 = vpop.permute.xlu0 %362
  %v364 = vsel %vm38, %v355, %v357
  %v365 = vsel %vm38, %v357, %v359
  %v366 = vsel %vm38, %v359, %v361
  %v367 = vsel %vm38, %v361, %v363
  %372 = vrot.lane.b32.xlu0 %v344, 126
  %v373 = vpop.permute.xlu0 %372
  %374 = vrot.lane.b32.xlu0 %v345, 126
  %v375 = vpop.permute.xlu0 %374
  %376 = vrot.lane.b32.xlu0 %v346, 126
  %v377 = vpop.permute.xlu0 %376
  %378 = vrot.lane.b32.xlu0 %v347, 126
  %v379 = vpop.permute.xlu0 %378
  %380 = vrot.lane.b32.xlu0 %v348, 126
  %v381 = vpop.permute.xlu0 %380
  %v382 = vsel %vm57, %v373, %v375
  %v383 = vsel %vm57, %v375, %v377
  %v384 = vsel %vm57, %v377, %v379
  %v385 = vsel %vm57, %v379, %v381
  %390 = vrot.lane.b32.xlu0 %v344, 112
  %v391 = vpop.permute.xlu0 %390
  %392 = vrot.lane.b32.xlu0 %v345, 112
  %v393 = vpop.permute.xlu0 %392
  %394 = vrot.lane.b32.xlu0 %v346, 112
  %v395 = vpop.permute.xlu0 %394
  %396 = vrot.lane.b32.xlu0 %v347, 112
  %v397 = vpop.permute.xlu0 %396
  %398 = vrot.lane.b32.xlu0 %v348, 112
  %v399 = vpop.permute.xlu0 %398
  %v400 = vsel %vm76, %v391, %v393
  %v401 = vsel %vm76, %v393, %v395
  %v402 = vsel %vm76, %v395, %v397
  %v403 = vsel %vm76, %v397, %v399
  %408 = vrot.lane.b32.xlu0 %v344, 111
  %v409 = vpop.permute.xlu0 %408
  %410 = vrot.lane.b32.xlu0 %v345, 111
  %v411 = vpop.permute.xlu0 %410
  %412 = vrot.lane.b32.xlu0 %v346, 111
  %v413 = vpop.permute.xlu0 %412
  %414 = vrot.lane.b32.xlu0 %v347, 111
  %v415 = vpop.permute.xlu0 %414
  %416 = vrot.lane.b32.xlu0 %v348, 111
  %v417 = vpop.permute.xlu0 %416
  %v418 = vsel %vm95, %v409, %v411
  %v419 = vsel %vm95, %v411, %v413
  %v420 = vsel %vm95, %v413, %v415
  %v421 = vsel %vm95, %v415, %v417
  %426 = vrot.lane.b32.xlu0 %v344, 110
  %v427 = vpop.permute.xlu0 %426
  %428 = vrot.lane.b32.xlu0 %v345, 110
  %v429 = vpop.permute.xlu0 %428
  %430 = vrot.lane.b32.xlu0 %v346, 110
  %v431 = vpop.permute.xlu0 %430
  %432 = vrot.lane.b32.xlu0 %v347, 110
  %v433 = vpop.permute.xlu0 %432
  %434 = vrot.lane.b32.xlu0 %v348, 110
  %v435 = vpop.permute.xlu0 %434
  %v436 = vsel %vm114, %v427, %v429
  %v437 = vsel %vm114, %v429, %v431
  %v438 = vsel %vm114, %v431, %v433
  %v439 = vsel %vm114, %v433, %v435
  %444 = vrot.lane.b32.xlu0 %v344, 96
  %v445 = vpop.permute.xlu0 %444
  %446 = vrot.lane.b32.xlu0 %v345, 96
  %v447 = vpop.permute.xlu0 %446
  %448 = vrot.lane.b32.xlu0 %v346, 96
  %v449 = vpop.permute.xlu0 %448
  %450 = vrot.lane.b32.xlu0 %v347, 96
  %v451 = vpop.permute.xlu0 %450
  %452 = vrot.lane.b32.xlu0 %v348, 96
  %v453 = vpop.permute.xlu0 %452
  %v454 = vsel %vm133, %v445, %v447
  %v455 = vsel %vm133, %v447, %v449
  %v456 = vsel %vm133, %v449, %v451
  %v457 = vsel %vm133, %v451, %v453
  %462 = vrot.lane.b32.xlu0 %v344, 95
  %v463 = vpop.permute.xlu0 %462
  %464 = vrot.lane.b32.xlu0 %v345, 95
  %v465 = vpop.permute.xlu0 %464
  %466 = vrot.lane.b32.xlu0 %v346, 95
  %v467 = vpop.permute.xlu0 %466
  %468 = vrot.lane.b32.xlu0 %v347, 95
  %v469 = vpop.permute.xlu0 %468
  %470 = vrot.lane.b32.xlu0 %v348, 95
  %v471 = vpop.permute.xlu0 %470
  %v472 = vsel %vm152, %v463, %v465
  %v473 = vsel %vm152, %v465, %v467
  %v474 = vsel %vm152, %v467, %v469
  %v475 = vsel %vm152, %v469, %v471
  %480 = vrot.lane.b32.xlu0 %v344, 94
  %v481 = vpop.permute.xlu0 %480
  %482 = vrot.lane.b32.xlu0 %v345, 94
  %v483 = vpop.permute.xlu0 %482
  %484 = vrot.lane.b32.xlu0 %v346, 94
  %v485 = vpop.permute.xlu0 %484
  %486 = vrot.lane.b32.xlu0 %v347, 94
  %v487 = vpop.permute.xlu0 %486
  %488 = vrot.lane.b32.xlu0 %v348, 94
  %v489 = vpop.permute.xlu0 %488
  %v490 = vsel %vm171, %v481, %v483
  %v491 = vsel %vm171, %v483, %v485
  %v492 = vsel %vm171, %v485, %v487
  %v493 = vsel %vm171, %v487, %v489
  %v498 = vld [vmem:[%s2] sm:$0xff]
  %v500 = vsel %vm181, %v498, 0
  %502 = vmatprep.subr.mxu0 %v341
  %503 = vmatpush1.msra.mxu0 %v340
  %504 = vmatprep.subr.mxu0 %v365
  %505 = vmatpush1.msra.mxu0 %v364
  %506 = vmatprep.subr.mxu0 %v383
  %507 = vmatpush1.msra.mxu0 %v382
  %508 = vmatprep.subr.mxu0 %v401
  %509 = vmatpush1.msra.mxu0 %v400
  %510 = vmatprep.subr.mxu0 %v419
  %511 = vmatpush1.msra.mxu0 %v418
  %512 = vmatprep.subr.mxu0 %v437
  %513 = vmatpush1.msra.mxu0 %v436
  %514 = vmatprep.subr.mxu0 %v455
  %515 = vmatpush1.msra.mxu0 %v454
  %516 = vmatprep.subr.mxu0 %v473
  %517 = vmatpush1.msra.mxu0 %v472
  %518 = vmatprep.subr.mxu0 %v491
  %519 = vmatpush1.msra.mxu0 %v490
  %520 = vmatprep.subr.mxu0 0.0
  %521 = vmatpush1.msra.mxu0 0.0
  %522 = vmatprep.subr.mxu0 0.0
  %523 = vmatpush1.msra.mxu0 0.0
  %524 = vmatprep.subr.mxu0 0.0
  %525 = vmatpush1.msra.mxu0 0.0
  %526 = vmatprep.subr.mxu0 0.0
  %527 = vmatpush1.msra.mxu0 0.0
  %528 = vmatprep.subr.mxu0 0.0
  %529 = vmatpush1.msra.mxu0 0.0
  %530 = vmatprep.subr.mxu0 0.0
  %531 = vmatpush1.msra.mxu0 0.0
  %532 = vmatprep.subr.mxu0 0.0
  %533 = vmatpush1.msra.mxu0 0.0
  %534 = vmatprep.subr.mxu0 0.0
  %535 = vmatpush1.msra.mxu0 0.0
  %536 = vmatprep.subr.mxu0 0.0
  %537 = vmatpush1.msra.mxu0 0.0
  %538 = vmatprep.subr.mxu0 0.0
  %539 = vmatpush1.msra.mxu0 0.0
  %540 = vmatprep.subr.mxu0 0.0
  %541 = vmatpush1.msra.mxu0 0.0
  %542 = vmatprep.subr.mxu0 0.0
  %543 = vmatpush1.msra.mxu0 0.0
  %544 = vmatprep.subr.mxu0 0.0
  %545 = vmatpush1.msra.mxu0 0.0
  %546 = vmatprep.subr.mxu0 0.0
  %547 = vmatpush1.msra.mxu0 0.0
  %548 = vmatprep.subr.mxu0 0.0
  %549 = vmatpush1.msra.mxu0 0.0
  %550 = vmatprep.subr.mxu0 0.0
  %551 = vmatpush1.msra.mxu0 0.0
  %552 = vmatprep.subr.mxu0 0.0
  %553 = vmatpush1.msra.mxu0 0.0
  %554 = vmatprep.subr.mxu0 0.0
  %555 = vmatpush1.msra.mxu0 0.0
  %556 = vmatprep.subr.mxu0 0.0
  %557 = vmatpush1.msra.mxu0 0.0
  %558 = vmatprep.subr.mxu0 0.0
  %559 = vmatpush1.msra.mxu0 0.0
  %560 = vmatprep.subr.mxu0 0.0
  %561 = vmatpush1.msra.mxu0 0.0
  %562 = vmatprep.subr.mxu0 0.0
  %563 = vmatpush1.msra.mxu0 0.0
  %564 = vmatprep.subr.mxu0 0.0
  %565 = vmatpush1.msra.mxu0 0.0
  %566 = vmatprep.mubr.f32.mxu0 0.0
  %567 = vmatmul.mubr.f32.gmra.mrb[0].mxu0 %v500
  %v568 = vpop.f32.mrb[0].mxu0
  %v569 = vadd.f32 0.0, %v568
  %v570 = vpop.f32.mrb[0].mxu0
  %v571 = vadd.f32 0.0, %v570
  %572 = vdwg.mxu0
  %573 = vmatprep.subr.mxu0 %v343
  %574 = vmatpush1.msra.mxu0 %v342
  %575 = vmatprep.subr.mxu0 %v367
  %576 = vmatpush1.msra.mxu0 %v366
  %577 = vmatprep.subr.mxu0 %v385
  %578 = vmatpush1.msra.mxu0 %v384
  %579 = vmatprep.subr.mxu0 %v403
  %580 = vmatpush1.msra.mxu0 %v402
  %581 = vmatprep.subr.mxu0 %v421
  %582 = vmatpush1.msra.mxu0 %v420
  %583 = vmatprep.subr.mxu0 %v439
  %584 = vmatpush1.msra.mxu0 %v438
  %585 = vmatprep.subr.mxu0 %v457
  %586 = vmatpush1.msra.mxu0 %v456
  %587 = vmatprep.subr.mxu0 %v475
  %588 = vmatpush1.msra.mxu0 %v474
  %589 = vmatprep.subr.mxu0 %v493
  %590 = vmatpush1.msra.mxu0 %v492
  %591 = vmatprep.subr.mxu0 0.0
  %592 = vmatpush1.msra.mxu0 0.0
  %593 = vmatprep.subr.mxu0 0.0
  %594 = vmatpush1.msra.mxu0 0.0
  %595 = vmatprep.subr.mxu0 0.0
  %596 = vmatpush1.msra.mxu0 0.0
  %597 = vmatprep.subr.mxu0 0.0
  %598 = vmatpush1.msra.mxu0 0.0
  %599 = vmatprep.subr.mxu0 0.0
  %600 = vmatpush1.msra.mxu0 0.0
  %601 = vmatprep.subr.mxu0 0.0
  %602 = vmatpush1.msra.mxu0 0.0
  %603 = vmatprep.subr.mxu0 0.0
  %604 = vmatpush1.msra.mxu0 0.0
  %605 = vmatprep.subr.mxu0 0.0
  %606 = vmatpush1.msra.mxu0 0.0
  %607 = vmatprep.subr.mxu0 0.0
  %608 = vmatpush1.msra.mxu0 0.0
  %609 = vmatprep.subr.mxu0 0.0
  %610 = vmatpush1.msra.mxu0 0.0
  %611 = vmatprep.subr.mxu0 0.0
  %612 = vmatpush1.msra.mxu0 0.0
  %613 = vmatprep.subr.mxu0 0.0
  %614 = vmatpush1.msra.mxu0 0.0
  %615 = vmatprep.subr.mxu0 0.0
  %616 = vmatpush1.msra.mxu0 0.0
  %617 = vmatprep.subr.mxu0 0.0
  %618 = vmatpush1.msra.mxu0 0.0
  %619 = vmatprep.subr.mxu0 0.0
  %620 = vmatpush1.msra.mxu0 0.0
  %621 = vmatprep.subr.mxu0 0.0
  %622 = vmatpush1.msra.mxu0 0.0
  %623 = vmatprep.subr.mxu0 0.0
  %624 = vmatpush1.msra.mxu0 0.0
  %625 = vmatprep.subr.mxu0 0.0
  %626 = vmatpush1.msra.mxu0 0.0
  %627 = vmatprep.subr.mxu0 0.0
  %628 = vmatpush1.msra.mxu0 0.0
  %629 = vmatprep.subr.mxu0 0.0
  %630 = vmatpush1.msra.mxu0 0.0
  %631 = vmatprep.subr.mxu0 0.0
  %632 = vmatpush1.msra.mxu0 0.0
  %633 = vmatprep.subr.mxu0 0.0
  %634 = vmatpush1.msra.mxu0 0.0
  %635 = vmatprep.subr.mxu0 0.0
  %636 = vmatpush1.msra.mxu0 0.0
  %637 = vmatprep.mubr.f32.mxu0 0.0
  %638 = vmatmul.mubr.f32.gmra.mrb[0].mxu0 %v500
  %v639 = vpop.f32.mrb[0].mxu0
  %v640 = vadd.f32 0.0, %v639
  %v641 = vpop.f32.mrb[0].mxu0
  %v642 = vadd.f32 0.0, %v641
  %643 = vdwg.mxu0
  %644 = vst [vmem:[%s3] sm:$0xff] %v569
  %645 = vst [vmem:[%s3 + $0x8] sm:$0xff] %v571
  %646 = vst [vmem:[%s3 + $0x10] sm:$0xff] %v640
  %647 = vst [vmem:[%s3 + $0x18] sm:$0xff] %v642
  // Predicated region
  $region18: #{block_forward.1} parent=0 // pred_check
    _
  $region19: #{block_forward.1} parent=0 // pred_check_branch
    %649 = sbr.rel (0) target = $region21
  $region20: #{block_forward.1} parent=0 // pred_region
    _
  $region21: #{block_forward.1} parent=0 // pred_fallthru
    _
  // Predicated region
  $region22: #{block_forward.1} parent=0 // pred_check
    _
  $region23: #{block_forward.1} parent=0 // pred_check_branch
    %651 = sbr.rel (0) target = $region25
  $region24: #{block_forward.1} parent=0 // pred_region
    _
  $region25: #{block_forward.1} parent=0 // pred_fallthru
    _

</llo_original>
